<compile_context>
chip_gen: v6e
topology: v6e:2x2x1
jax: 0.10.0
libtpu: 0.0.40
codegen_flags: <defaults>
</compile_context>

<pallas_src>
import jax
import jax.numpy as jnp
from jax.experimental import pallas as pl
from jax.experimental.pallas import tpu as pltpu


def _make_swish_kernel(beta: float):
    beta_f = float(beta)

    def kernel(x_ref, o_ref):
        # Compute in f32 for accuracy (required on v5e: no bf16 VPU/EUP);
        # cast back so bf16 inputs keep bf16 HBM traffic.
        xf = x_ref[...].astype(jnp.float32)
        # sigmoid written explicitly: exp -> EUP, reciprocal -> EUP-friendly.
        # approx=False keeps bit-level agreement with the JAX reference.
        e = jnp.exp(-beta_f * xf)
        y = xf * pl.reciprocal(1.0 + e, approx=False)
        o_ref[...] = y.astype(o_ref.dtype)

    return kernel


def _vmem_capacity_bytes() -> int:
    try:
        return int(pltpu.get_tpu_info().vmem_capacity_bytes)
    except Exception:
        return 64 * 1024 * 1024  # conservative (v7x per-TC) default


def _sublane_granule(itemsize: int) -> int:
    # Packed-dtype sublane granule: f32 -> 8, bf16/fp16 -> 16, int8/fp8 -> 32.
    if itemsize >= 4:
        return 8
    if itemsize == 2:
        return 16
    return 32


def _even_steps_tile(total: int, max_tile: int, granule: int) -> int:
    """Granule-multiple tile <= ~max_tile giving an even (>=2) step count."""
    steps = max(2, pl.cdiv(total, max_tile))
    if steps % 2:
        steps += 1
    tile = max(granule, pl.cdiv(pl.cdiv(total, steps), granule) * granule)
    # Rounding the tile up can change the step count; nudge down (best effort).
    for _ in range(4):
        if pl.cdiv(total, tile) % 2 == 0 or tile <= granule:
            break
        tile -= granule
    return tile


def swish(x: jax.Array, beta: float = 1.0) -> jax.Array:
    """Elementwise Swish. Accepts any shape (e.g. NCHW); same shape/dtype out."""
    orig_shape = x.shape
    orig_dtype = x.dtype
    n = x.size
    itemsize = jnp.dtype(orig_dtype).itemsize
    granule = _sublane_granule(itemsize)

    # Generation-aware block / VMEM budget (pure HBM-BW-bound kernel; the only
    # non-bandwidth per-step cost is ~0.35 us DMA setup, so bigger blocks on
    # faster-HBM chips, within in(x2)+out(x2) double-buffer VMEM residency).
    vmem_cap = _vmem_capacity_bytes()
    if vmem_cap >= 96 * 1024 * 1024:        # v5e / v6e (128 MiB VMEM)
        target_block_bytes = 12 * 1024 * 1024
        vmem_limit_bytes = 64 * 1024 * 1024
    else:                                   # v7x (64 MiB VMEM per TC)
        target_block_bytes = 8 * 1024 * 1024
        vmem_limit_bytes = 48 * 1024 * 1024

    split_threshold_bytes = 2 * 1024 * 1024  # above this, force even >=2 grid
    compiler_params = pltpu.CompilerParams(
        dimension_semantics=("parallel",),
        vmem_limit_bytes=vmem_limit_bytes,
    )
    kernel = _make_swish_kernel(beta)

    # --- lane-width selection: widest 128-multiple divisor of n, preferring
    # widths that leave rows a multiple of 8 (full vregs, long DMAs). ---
    candidates = (2048, 1024, 512, 256, 128)
    lanes = next((c for c in candidates if n % c == 0 and (n // c) % 8 == 0), None)
    if lanes is None:
        lanes = next((c for c in candidates if n % c == 0 and (n // c) >= 8), None)
    if lanes is None:
        lanes = next((c for c in candidates if n % c == 0), None)

    if lanes is not None:
        # ---------- aligned path: free 2-D lane-dense view, no copies ----------
        x2d = jnp.ravel(x).reshape(-1, lanes)
        rows = x2d.shape[0]
        tensor_bytes = rows * lanes * itemsize
        row_bytes = lanes * itemsize

        if tensor_bytes <= split_threshold_bytes or rows < 2 * granule:
            tile_rows = rows  # single full-extent block (always legal)
        else:
            rows_per_target = max(granule,
                                  (target_block_bytes // row_bytes) // granule * granule)
            tile_rows = _even_steps_tile(rows, rows_per_target, granule)

        grid = (pl.cdiv(rows, tile_rows),)

        out = pl.pallas_call(
            kernel,
            out_shape=jax.ShapeDtypeStruct((rows, lanes), orig_dtype),
            grid=grid,
            in_specs=[pl.BlockSpec((tile_rows, lanes), lambda i: (i, 0))],
            out_specs=pl.BlockSpec((tile_rows, lanes), lambda i: (i, 0)),
            compiler_params=compiler_params,
        )(x2d)
        return out.reshape(orig_shape)

    # ---------- ragged path: n not a multiple of 128 ----------
    if n < 128:
        # Tiny tensor: a kernel launch is pure overhead; plain XLA is fine.
        xf = x.astype(jnp.float32)
        return (xf * jax.nn.sigmoid(float(beta) * xf)).astype(orig_dtype)

    # Run a 1-D grid over the flat array; the last block is partial (OOB reads
    # padded, OOB writes dropped) -- no pad or slice HBM passes.
    flat = jnp.ravel(x)
    blk_granule = 8 * 128  # one f32 vreg worth of elements
    max_blk = max(blk_granule,
                  (target_block_bytes // itemsize) // blk_granule * blk_granule)
    if n > split_threshold_bytes // itemsize and n >= 2 * blk_granule:
        blk = _even_steps_tile(n, max_blk, blk_granule)
    else:
        blk = min(max_blk, pl.cdiv(n, blk_granule) * blk_granule)

    grid = (pl.cdiv(n, blk),)
    out = pl.pallas_call(
        kernel,
        out_shape=jax.ShapeDtypeStruct((n,), orig_dtype),
        grid=grid,
        in_specs=[pl.BlockSpec((blk,), lambda i: (i,))],
        out_specs=pl.BlockSpec((blk,), lambda i: (i,)),
        compiler_params=compiler_params,
    )(flat)
    return out.reshape(orig_shape)


if __name__ == "__main__":
    key = jax.random.PRNGKey(0)
    # NCHW input consistent with the encoder module's conv layout.
    x = jax.random.normal(key, (2, 4, 16, 16), dtype=jnp.float32)
    beta = 1.0

    y = swish(x, beta=beta)
    y = jax.block_until_ready(y)

    # Reference check in plain JAX.
    y_ref = x * jax.nn.sigmoid(beta * x)
    assert y.shape == x.shape and y.dtype == x.dtype
    assert jnp.allclose(y, y_ref, atol=1e-6, rtol=1e-6)

    print("KERNEL_OK")
</pallas_src>

<mosaic_0001>
module attributes {stable_mosaic.version = 11 : i64} {
  func.func @kernel(%arg0: i32, %arg1: memref<8x256xf32, #tpu.memory_space<vmem>>, %arg2: memref<8x256xf32, #tpu.memory_space<vmem>>) attributes {dimension_semantics = [#tpu.dimension_semantics<parallel>], iteration_bounds = array<i64: 1>, scalar_prefetch = 0 : i64, scratch_operands = 0 : i64, tpu.core_type = #tpu.core_type<tc>, window_params = [{transform_indices = @transform_0, window_bounds = array<i64: 8, 256>}, {transform_indices = @transform_1, window_bounds = array<i64: 8, 256>}]} {
    %c0 = arith.constant 0 : index
    %c0_0 = arith.constant 0 : index
    %0 = vector.load %arg1[%c0, %c0_0] : memref<8x256xf32, #tpu.memory_space<vmem>>, vector<8x256xf32>
    %cst = arith.constant -1.000000e+00 : f32
    %1 = vector.broadcast %cst : f32 to vector<8x256xf32>
    %2 = arith.mulf %1, %0 : vector<8x256xf32>
    %3 = math.exp %2 : vector<8x256xf32>
    %cst_1 = arith.constant 1.000000e+00 : f32
    %4 = vector.broadcast %cst_1 : f32 to vector<8x256xf32>
    %5 = arith.addf %4, %3 : vector<8x256xf32>
    %6 = tpu.reciprocal %5 : vector<8x256xf32> -> vector<8x256xf32>
    %7 = arith.mulf %0, %6 : vector<8x256xf32>
    %c0_2 = arith.constant 0 : index
    %c0_3 = arith.constant 0 : index
    %8 = vector.load %arg2[%c0_2, %c0_3] : memref<8x256xf32, #tpu.memory_space<vmem>>, vector<8x256xf32>
    tpu.vector_store %arg2[%c0_2, %c0_3], %7 {strides = array<i32>} : memref<8x256xf32, #tpu.memory_space<vmem>>, vector<8x256xf32>,
    return
  }
  func.func @transform_0(%arg0: i32) -> (i32, i32) {
    %c0_i32 = arith.constant 0 : i32
    %c0_i32_0 = arith.constant 0 : i32
    return %arg0, %c0_i32 : i32, i32
  }
  func.func @transform_1(%arg0: i32) -> (i32, i32) {
    %c0_i32 = arith.constant 0 : i32
    %c0_i32_0 = arith.constant 0 : i32
    return %arg0, %c0_i32 : i32, i32
  }
}

</mosaic_0001>

<llo_original>
// kernel: tpu_custom_call.1
$region0: #{tpu_custom_call.1}
  #allocation0 [shape = 'u32[]', space=smem, size = 0x4, offset = 0x4, fixed_abs, tag = 'smem constant byte address 0x4 - core index']
  #allocation1 [shape = 'u32[144,128]{1,0:T(1,128)}', space=vmem, size = 0x12000, scoped, tag = 'internal scratch']
  %s0 = inlined_call_operand.hbm [shape: f32[8,256], index: 0, kind: input, shape index: {}]
  %s1 = inlined_call_operand.hbm [shape: f32[8,256], index: 1, kind: output, shape index: {}]
  %s2 = sld [smem:[#allocation0]]
  $region18: #{tpu_custom_call.1} parent=0
    _
  %s4 = ssub.s32 1, %s2
  %s5 = scalar_select 0, %s4, %s2
  $region1: #{tpu_custom_call.1} parent=0
    #allocation2 [shape = 'u8[8192]{0}', space=vmem, size = 0x2000, scoped, tag = 'input window, operand 0, single buffered']
    #allocation3 [shape = 's32[1]{0}', space=sflag, size = 0x4, scoped, tag = 'scoped memory for tpu_custom_call.1']
    #allocation4 [shape = 's32[1]{0}', space=sflag, size = 0x4, scoped, tag = 'scoped memory for tpu_custom_call.1']
    #allocation5 [shape = 'u8[8192]{0}', space=vmem, size = 0x2000, scoped, tag = 'output window, operand 0, single buffered']
    %6 = vsyncpa [#allocation3], 0
    %7 = vsyncpa [#allocation4], 0
    // Predicated region
    $region2: #{tpu_custom_call.1} parent=1 // pred_check
      _
    $region3: #{tpu_custom_call.1} parent=1 // pred_check_branch
      %9 = sbr.rel (0) target = $region5
    $region4: #{tpu_custom_call.1} parent=1 // pred_region
      %s11 = ssub.s32 256, 256
      %12 = vsyncadd [#allocation3], %s11
      %s14 = sshll.u32 [#allocation2], 4
      %s15 = int_to_ptr.vmem [resolvable:$true] %s14
      %17 = dma.hbm_to_vmem [thread:$0]  %s0, 256, %s15, [#allocation3]
    $region5: #{tpu_custom_call.1} parent=1 // pred_fallthru
      _
    // Predicated region
    $region6: #{tpu_custom_call.1} parent=1 // pred_check
      _
    $region7: #{tpu_custom_call.1} parent=1 // pred_check_branch
      %19 = sbr.rel (0) target = $region9
    $region8: #{tpu_custom_call.1} parent=1 // pred_region
      %20 = dma.done [#allocation3], 256
    $region9: #{tpu_custom_call.1} parent=1 // pred_fallthru
      _
    %v21 = vld [vmem:[#allocation2] sm:$0xff]
    %v22 = vld [vmem:[#allocation2 + $0x8] sm:$0xff]
    %v23 = vmul.f32 %v21, -1.0
    %v24 = vmul.f32 %v22, -1.0
    %v25 = vmul.f32 %v23, 1.442695
    %v26 = vpow.pop %v25
    %v27 = vmul.f32 %v24, 1.442695
    %v28 = vpow.pop %v27
    %v29 = vadd.f32 %v26, 1.0
    %v30 = vadd.f32 %v28, 1.0
    %v31 = vrcp.pop %v29
    %v32 = vrcp.pop %v30
    %v33 = vmul.f32 %v21, %v31
    %v34 = vmul.f32 %v22, %v32
    %35 = vst [vmem:[#allocation5] sm:$0xff] %v33
    %36 = vst [vmem:[#allocation5 + $0x8] sm:$0xff] %v34
    // Predicated region
    $region10: #{tpu_custom_call.1} parent=1 // pred_check
      _
    $region11: #{tpu_custom_call.1} parent=1 // pred_check_branch
      %38 = sbr.rel (0) target = $region13
    $region12: #{tpu_custom_call.1} parent=1 // pred_region
      %s40 = ssub.s32 256, 256
      %41 = vsyncadd [#allocation4], %s40
      %s43 = sshll.u32 [#allocation5], 4
      %s44 = int_to_ptr.vmem [resolvable:$true] %s43
      %46 = dma.vmem_to_hbm [thread:$0]  %s44, 256, %s1, [#allocation4]
    $region13: #{tpu_custom_call.1} parent=1 // pred_fallthru
      _
    // Predicated region
    $region14: #{tpu_custom_call.1} parent=1 // pred_check
      _
    $region15: #{tpu_custom_call.1} parent=1 // pred_check_branch
      %48 = sbr.rel (0) target = $region17
    $region16: #{tpu_custom_call.1} parent=1 // pred_region
      %49 = dma.done [#allocation4], 256
    $region17: #{tpu_custom_call.1} parent=1 // pred_fallthru
      _
    %50 = vsyncpa [#allocation3], 1
    %51 = vsyncpa [#allocation4], 1

</llo_original>
